<compile_context>
chip_gen: v7x
topology: tpu7x:2x2x1
jax: 0.10.0
libtpu: 0.0.40
codegen_flags: <defaults>
</compile_context>

<pallas_src>
import jax
import jax.numpy as jnp
from jax.experimental import pallas as pl
from jax.experimental.pallas import tpu as pltpu  # noqa: F401  (TPU backend)


def se_block_kernel(se_ref, w1t_ref, b1_ref, x_ref, w2_ref, o_ref):
    # se_ref : (1, 40)    squeeze vector (pre-ReLU)
    # w1t_ref: (40, 144)  conv2d34 weight, pre-transposed and pre-scaled by 1/6
    # b1_ref : (1, 144)   conv2d34 bias, pre-folded: b/6 + 0.5
    # x_ref  : (144, 196) x95 in (C, HW) layout
    # w2_ref : (48, 144)  conv2d35 weight (1x1, no bias), raw (Cout, Cin)
    # o_ref  : (48, 196)
    se = jnp.maximum(se_ref[...], 0.0)                                     # ReLU
    # Hardsigmoid already folded into w1t/b1: gate = clip(se @ w1t + b1', 0, 1)
    z = jnp.dot(se, w1t_ref[...], preferred_element_type=jnp.float32)      # (1,144)
    gate = jnp.clip(z + b1_ref[...], 0.0, 1.0)                             # (1,144)
    # Fold the per-channel gate into the second conv's weight (contraction axis
    # scaling commutes with the matmul), then one bf16 MXU contraction with a
    # lane-dense (196-wide) f32 output.
    w2_scaled = (w2_ref[...] * gate).astype(jnp.bfloat16)                  # (48,144)
    o_ref[...] = jnp.dot(w2_scaled, x_ref[...].astype(jnp.bfloat16),
                         preferred_element_type=jnp.float32)               # (48,196)


def se_block(x97, x95, w1, b1, w2):
    """x97: (1,40,1,1) f32, x95: (1,144,14,14) f32. Returns (1,48,14,14) f32."""
    N, C_in, H, W = x95.shape
    assert N == 1
    HW = H * W
    C_mid, C_se = w1.shape[0], w1.shape[1]   # 144, 40
    C_out = w2.shape[0]                      # 48

    # Free reshapes (row-major contiguous, no transposes on activations).
    x_cm = x95.reshape(C_in, HW)             # (144,196)
    se_vec = x97.reshape(1, C_se)            # (1,40)

    # One-time weight prep (tiny XLA ops; constant-folded for frozen weights):
    # transpose w1 so the kernel has no `.T`, and fold the hardsigmoid affine
    # (z/6 + 0.5) into weight/bias of conv2d34.
    w1t_2d = (w1.reshape(C_mid, C_se) * (1.0 / 6.0)).T   # (40,144)
    b1_2d = (b1 * (1.0 / 6.0) + 0.5).reshape(1, C_mid)   # (1,144)
    w2_2d = w2.reshape(C_out, C_mid)                     # (48,144)

    flops = 2 * C_out * C_mid * HW + 2 * C_se * C_mid
    bytes_accessed = 4 * (se_vec.size + w1t_2d.size + b1_2d.size
                          + x_cm.size + w2_2d.size + C_out * HW)

    out_cm = pl.pallas_call(
        se_block_kernel,
        out_shape=jax.ShapeDtypeStruct((C_out, HW), jnp.float32),
        in_specs=[
            pl.BlockSpec(se_vec.shape, lambda: (0, 0)),
            pl.BlockSpec(w1t_2d.shape, lambda: (0, 0)),
            pl.BlockSpec(b1_2d.shape, lambda: (0, 0)),
            pl.BlockSpec(x_cm.shape, lambda: (0, 0)),
            pl.BlockSpec(w2_2d.shape, lambda: (0, 0)),
        ],
        out_specs=pl.BlockSpec((C_out, HW), lambda: (0, 0)),
        cost_estimate=pl.CostEstimate(flops=flops, transcendentals=0,
                                      bytes_accessed=bytes_accessed),
    )(se_vec, w1t_2d, b1_2d, x_cm, w2_2d)

    # (48, HW) -> (1, 48, H, W): also a free reshape.
    return out_cm.reshape(1, C_out, H, W)


if __name__ == "__main__":
    key = jax.random.PRNGKey(0)
    k1, k2, k3, k4, k5 = jax.random.split(key, 5)

    # Inputs (shapes from the module)
    x97 = jax.random.normal(k1, (1, 40, 1, 1), dtype=jnp.float32)
    x95 = jax.random.normal(k2, (1, 144, 14, 14), dtype=jnp.float32)

    # Deterministic parameter init (Conv2d weight shapes from __init__)
    w1 = jax.random.normal(k3, (144, 40, 1, 1), dtype=jnp.float32) * 0.1   # conv2d34 weight
    b1 = jax.random.normal(k4, (144,), dtype=jnp.float32) * 0.1            # conv2d34 bias
    w2 = jax.random.normal(k5, (48, 144, 1, 1), dtype=jnp.float32) * 0.1   # conv2d35 weight (no bias)

    out = jax.jit(se_block)(x97, x95, w1, b1, w2)
    jax.block_until_ready(out)

    # Reference check in plain JAX (full f32, no Pallas).
    se = jnp.maximum(x97.reshape(1, 40), 0.0)
    z = se @ w1.reshape(144, 40).T + b1[None, :]
    gate = jnp.clip(z / 6.0 + 0.5, 0.0, 1.0)                    # Hardsigmoid, (1,144)
    scaled = x95 * gate.reshape(1, 144, 1, 1)
    ref = jnp.einsum('nchw,oc->nohw', scaled, w2.reshape(48, 144))
    assert out.shape == (1, 48, 14, 14)
    # Tolerance loosened vs. the f32 version: the big contraction runs in bf16
    # on the MXU (f32 accumulation).
    assert jnp.allclose(out, ref, atol=2e-2, rtol=2e-2)

    print("KERNEL_OK")
</pallas_src>

<mosaic_0001>
module attributes {stable_mosaic.version = 11 : i64} {
  func.func @se_block_kernel(%arg0: memref<1x40xf32, #tpu.memory_space<vmem>>, %arg1: memref<40x144xf32, #tpu.memory_space<vmem>>, %arg2: memref<1x144xf32, #tpu.memory_space<vmem>>, %arg3: memref<144x196xf32, #tpu.memory_space<vmem>>, %arg4: memref<48x144xf32, #tpu.memory_space<vmem>>, %arg5: memref<48x196xf32, #tpu.memory_space<vmem>>) attributes {dimension_semantics = [], scalar_prefetch = 0 : i64, scratch_operands = 0 : i64, tpu.core_type = #tpu.core_type<tc>} {
    %c0 = arith.constant 0 : index
    %c0_0 = arith.constant 0 : index
    %0 = vector.load %arg0[%c0, %c0_0] : memref<1x40xf32, #tpu.memory_space<vmem>>, vector<1x40xf32>
    %cst = arith.constant 0.000000e+00 : f32
    %1 = vector.broadcast %cst : f32 to vector<1x40xf32>
    %2 = arith.maximumf %0, %1 : vector<1x40xf32>
    %c0_1 = arith.constant 0 : index
    %c0_2 = arith.constant 0 : index
    %3 = vector.load %arg1[%c0_1, %c0_2] : memref<40x144xf32, #tpu.memory_space<vmem>>, vector<40x144xf32>
    %cst_3 = arith.constant dense<0.000000e+00> : vector<1x144xf32>
    %4 = tpu.matmul %2, %3, %cst_3 {dimension_numbers = #tpu.dot_dimension_numbers<[1], [0], [0], [1], [0, 0, 1, 1], [], []>} : vector<1x40xf32>, vector<40x144xf32>, vector<1x144xf32> -> vector<1x144xf32>
    %c0_4 = arith.constant 0 : index
    %c0_5 = arith.constant 0 : index
    %5 = vector.load %arg2[%c0_4, %c0_5] : memref<1x144xf32, #tpu.memory_space<vmem>>, vector<1x144xf32>
    %6 = arith.addf %4, %5 : vector<1x144xf32>
    %cst_6 = arith.constant 0.000000e+00 : f32
    %cst_7 = arith.constant 1.000000e+00 : f32
    %7 = vector.broadcast %cst_6 : f32 to vector<1x144xf32>
    %8 = arith.maximumf %7, %6 : vector<1x144xf32>
    %9 = vector.broadcast %cst_7 : f32 to vector<1x144xf32>
    %10 = arith.minimumf %9, %8 : vector<1x144xf32>
    %c0_8 = arith.constant 0 : index
    %c0_9 = arith.constant 0 : index
    %11 = vector.load %arg4[%c0_8, %c0_9] : memref<48x144xf32, #tpu.memory_space<vmem>>, vector<48x144xf32>
    %12 = vector.broadcast %10 : vector<1x144xf32> to vector<48x144xf32>
    %13 = arith.mulf %11, %12 : vector<48x144xf32>
    %14 = arith.truncf %13 : vector<48x144xf32> to vector<48x144xbf16>
    %c0_10 = arith.constant 0 : index
    %c0_11 = arith.constant 0 : index
    %15 = vector.load %arg3[%c0_10, %c0_11] : memref<144x196xf32, #tpu.memory_space<vmem>>, vector<144x196xf32>
    %16 = arith.truncf %15 : vector<144x196xf32> to vector<144x196xbf16>
    %cst_12 = arith.constant dense<0.000000e+00> : vector<48x196xf32>
    %17 = tpu.matmul %14, %16, %cst_12 {dimension_numbers = #tpu.dot_dimension_numbers<[1], [0], [0], [1], [0, 0, 1, 1], [], []>} : vector<48x144xbf16>, vector<144x196xbf16>, vector<48x196xf32> -> vector<48x196xf32>
    %c0_13 = arith.constant 0 : index
    %c0_14 = arith.constant 0 : index
    %18 = vector.load %arg5[%c0_13, %c0_14] : memref<48x196xf32, #tpu.memory_space<vmem>>, vector<48x196xf32>
    tpu.vector_store %arg5[%c0_13, %c0_14], %17 {strides = array<i32>} : memref<48x196xf32, #tpu.memory_space<vmem>>, vector<48x196xf32>,
    return
  }
}

</mosaic_0001>

<llo_original>
// kernel: se_block.1
$region0: #{se_block.1}
  #allocation0 [shape = 'u32[]', space=smem, size = 0x4, offset = 0x4, fixed_abs, tag = 'smem constant byte address 0x4 - core index']
  #allocation1 [shape = 'u32[144,128]{1,0:T(1,128)}', space=vmem, size = 0x12000, scoped, tag = 'internal scratch']
  %s0 = inlined_call_operand.vmem [shape: f32[1,40], index: 0, kind: input, shape index: {}]
  %s1 = inlined_call_operand.vmem [shape: f32[40,144], index: 1, kind: input, shape index: {}]
  %s2 = inlined_call_operand.vmem [shape: f32[1,144], index: 2, kind: input, shape index: {}]
  %s3 = inlined_call_operand.vmem [shape: f32[144,196], index: 3, kind: input, shape index: {}]
  %s4 = inlined_call_operand.vmem [shape: f32[48,144], index: 4, kind: input, shape index: {}]
  %s5 = inlined_call_operand.vmem [shape: f32[48,196], index: 5, kind: output, shape index: {}]
  %s6 = sld [smem:[#allocation0]]
  $region30: #{se_block.1} parent=0
    _
  %s8 = ssub.s32 1, %s6
  %s9 = scalar_select 0, %s8, %s6
  // Predicated region
  $region2: #{se_block.1} parent=0 // pred_check
    _
  $region3: #{se_block.1} parent=0 // pred_check_branch
    %11 = sbr.rel (0) target = $region5
  $region4: #{se_block.1} parent=0 // pred_region
    _
  $region5: #{se_block.1} parent=0 // pred_fallthru
    _
  // Predicated region
  $region6: #{se_block.1} parent=0 // pred_check
    _
  $region7: #{se_block.1} parent=0 // pred_check_branch
    %13 = sbr.rel (0) target = $region9
  $region8: #{se_block.1} parent=0 // pred_region
    _
  $region9: #{se_block.1} parent=0 // pred_fallthru
    _
  // Predicated region
  $region10: #{se_block.1} parent=0 // pred_check
    _
  $region11: #{se_block.1} parent=0 // pred_check_branch
    %15 = sbr.rel (0) target = $region13
  $region12: #{se_block.1} parent=0 // pred_region
    _
  $region13: #{se_block.1} parent=0 // pred_fallthru
    _
  // Predicated region
  $region14: #{se_block.1} parent=0 // pred_check
    _
  $region15: #{se_block.1} parent=0 // pred_check_branch
    %17 = sbr.rel (0) target = $region17
  $region16: #{se_block.1} parent=0 // pred_region
    _
  $region17: #{se_block.1} parent=0 // pred_fallthru
    _
  // Predicated region
  $region18: #{se_block.1} parent=0 // pred_check
    _
  $region19: #{se_block.1} parent=0 // pred_check_branch
    %19 = sbr.rel (0) target = $region21
  $region20: #{se_block.1} parent=0 // pred_region
    _
  $region21: #{se_block.1} parent=0 // pred_fallthru
    _
  %v21 = vld [vmem:[%s0] sm:$0x1]
  %v22 = vmax.f32 %v21, 0.0
  %v23 = vld [vmem:[%s1] sm:$0xff]
  %v24 = vld [vmem:[%s1 + $0x8] sm:$0xff]
  %v25 = vld [vmem:[%s1 + $0x10] sm:$0xff]
  %v26 = vld [vmem:[%s1 + $0x18] sm:$0xff]
  %v27 = vld [vmem:[%s1 + $0x20] sm:$0xff]
  %v28 = vld [vmem:[%s1 + $0x28] sm:$0xff]
  %v29 = vld [vmem:[%s1 + $0x30] sm:$0xff]
  %v30 = vld [vmem:[%s1 + $0x38] sm:$0xff]
  %v31 = vld [vmem:[%s1 + $0x40] sm:$0xff]
  %v32 = vld [vmem:[%s1 + $0x48] sm:$0xff]
  %v33 = vld [vmem:[%s2] sm:$0x3]
  %v35 = vlaneseq
  %v36 = vshrl.u32 %v35, 7
  %v37 = vsub.s32 0, %v36
  %v38 = vrot.slane %v33, %v37
  %v39 = vlaneseq
  %v40 = vshrl.u32 %v39, 7
  %v41 = vsub.s32 1, %v40
  %v42 = vrot.slane %v33, %v41
  %vm45 = vcmask 326656
  %v47 = vsel %vm45, %v22, 0
  %49 = vmatprep.subr.mxu0 %v24
  %50 = vmatpush1.msra.mxu0 %v23
  %51 = vmatprep.subr.mxu0 %v26
  %52 = vmatpush1.msra.mxu0 %v25
  %53 = vmatprep.subr.mxu0 %v28
  %54 = vmatpush1.msra.mxu0 %v27
  %55 = vmatprep.subr.mxu0 %v30
  %56 = vmatpush1.msra.mxu0 %v29
  %57 = vmatprep.subr.mxu0 %v32
  %58 = vmatpush1.msra.mxu0 %v31
  %59 = vmatprep.subr.mxu0 0.0
  %60 = vmatpush1.msra.mxu0 0.0
  %61 = vmatprep.subr.mxu0 0.0
  %62 = vmatpush1.msra.mxu0 0.0
  %63 = vmatprep.subr.mxu0 0.0
  %64 = vmatpush1.msra.mxu0 0.0
  %65 = vmatprep.subr.mxu0 0.0
  %66 = vmatpush1.msra.mxu0 0.0
  %67 = vmatprep.subr.mxu0 0.0
  %68 = vmatpush1.msra.mxu0 0.0
  %69 = vmatprep.subr.mxu0 0.0
  %70 = vmatpush1.msra.mxu0 0.0
  %71 = vmatprep.subr.mxu0 0.0
  %72 = vmatpush1.msra.mxu0 0.0
  %73 = vmatprep.subr.mxu0 0.0
  %74 = vmatpush1.msra.mxu0 0.0
  %75 = vmatprep.subr.mxu0 0.0
  %76 = vmatpush1.msra.mxu0 0.0
  %77 = vmatprep.subr.mxu0 0.0
  %78 = vmatpush1.msra.mxu0 0.0
  %79 = vmatprep.subr.mxu0 0.0
  %80 = vmatpush1.msra.mxu0 0.0
  %81 = vmatprep.subr.mxu0 0.0
  %82 = vmatpush1.msra.mxu0 0.0
  %83 = vmatprep.subr.mxu0 0.0
  %84 = vmatpush1.msra.mxu0 0.0
  %85 = vmatprep.subr.mxu0 0.0
  %86 = vmatpush1.msra.mxu0 0.0
  %87 = vmatprep.subr.mxu0 0.0
  %88 = vmatpush1.msra.mxu0 0.0
  %89 = vmatprep.subr.mxu0 0.0
  %90 = vmatpush1.msra.mxu0 0.0
  %91 = vmatprep.subr.mxu0 0.0
  %92 = vmatpush1.msra.mxu0 0.0
  %93 = vmatprep.subr.mxu0 0.0
  %94 = vmatpush1.msra.mxu0 0.0
  %95 = vmatprep.subr.mxu0 0.0
  %96 = vmatpush1.msra.mxu0 0.0
  %97 = vmatprep.subr.mxu0 0.0
  %98 = vmatpush1.msra.mxu0 0.0
  %99 = vmatprep.subr.mxu0 0.0
  %100 = vmatpush1.msra.mxu0 0.0
  %101 = vmatprep.subr.mxu0 0.0
  %102 = vmatpush1.msra.mxu0 0.0
  %103 = vmatprep.subr.mxu0 0.0
  %104 = vmatpush1.msra.mxu0 0.0
  %105 = vmatprep.subr.mxu0 0.0
  %106 = vmatpush1.msra.mxu0 0.0
  %107 = vmatprep.subr.mxu0 0.0
  %108 = vmatpush1.msra.mxu0 0.0
  %109 = vmatprep.subr.mxu0 0.0
  %110 = vmatpush1.msra.mxu0 0.0
  %111 = vmatprep.subr.mxu0 0.0
  %112 = vmatpush1.msra.mxu0 0.0
  %113 = vmatprep.mubr.f32.mxu0 0.0
  %114 = vmatmul.mubr.f32.gmra.mrb[0].mxu0 %v47
  %v115 = vpop.f32.mrb[0].mxu0
  %v116 = vadd.f32 %v38, %v115
  %v117 = vpop.f32.mrb[0].mxu0
  %v118 = vadd.f32 %v42, %v117
  %119 = vdwg.mxu0
  %v120 = vmax.f32 %v116, 0.0
  %v121 = vmax.f32 %v118, 0.0
  %v122 = vmin.f32 %v120, 1.0
  %v123 = vmin.f32 %v121, 1.0
  %v124 = vld [vmem:[%s4] sm:$0xff]
  %v125 = vld [vmem:[%s4 + $0x8] sm:$0xff]
  %v126 = vld [vmem:[%s4 + $0x10] sm:$0xff]
  %v127 = vld [vmem:[%s4 + $0x18] sm:$0xff]
  %v128 = vld [vmem:[%s4 + $0x20] sm:$0xff]
  %v129 = vld [vmem:[%s4 + $0x28] sm:$0xff]
  %v130 = vld [vmem:[%s4 + $0x30] sm:$0xff]
  %v131 = vld [vmem:[%s4 + $0x38] sm:$0xff]
  %v132 = vld [vmem:[%s4 + $0x40] sm:$0xff]
  %v133 = vld [vmem:[%s4 + $0x48] sm:$0xff]
  %v134 = vld [vmem:[%s4 + $0x50] sm:$0xff]
  %v135 = vld [vmem:[%s4 + $0x58] sm:$0xff]
  %v136 = vlaneseq
  %v137 = vshrl.u32 %v136, 7
  %v138 = vsub.s32 0, %v137
  %v139 = vrot.slane %v122, %v138
  %v140 = vlaneseq
  %v141 = vshrl.u32 %v140, 7
  %v142 = vsub.s32 0, %v141
  %v143 = vrot.slane %v123, %v142
  %v144 = vmul.f32 %v124, %v139
  %v145 = vmul.f32 %v125, %v143
  %v146 = vmul.f32 %v126, %v139
  %v147 = vmul.f32 %v127, %v143
  %v148 = vmul.f32 %v128, %v139
  %v149 = vmul.f32 %v129, %v143
  %v150 = vmul.f32 %v130, %v139
  %v151 = vmul.f32 %v131, %v143
  %v152 = vmul.f32 %v132, %v139
  %v153 = vmul.f32 %v133, %v143
  %v154 = vmul.f32 %v134, %v139
  %v155 = vmul.f32 %v135, %v143
  %v156 = vpack.c.bf16 %v146, %v144
  %v157 = vpack.c.bf16 %v147, %v145
  %v158 = vpack.c.bf16 %v150, %v148
  %v159 = vpack.c.bf16 %v151, %v149
  %v160 = vpack.c.bf16 %v154, %v152
  %v161 = vpack.c.bf16 %v155, %v153
  %v162 = vld [vmem:[%s3] sm:$0xff]
  %v163 = vld [vmem:[%s3 + $0x8] sm:$0xff]
  %v164 = vld [vmem:[%s3 + $0x10] sm:$0xff]
  %v165 = vld [vmem:[%s3 + $0x18] sm:$0xff]
  %v166 = vld [vmem:[%s3 + $0x20] sm:$0xff]
  %v167 = vld [vmem:[%s3 + $0x28] sm:$0xff]
  %v168 = vld [vmem:[%s3 + $0x30] sm:$0xff]
  %v169 = vld [vmem:[%s3 + $0x38] sm:$0xff]
  %v170 = vld [vmem:[%s3 + $0x40] sm:$0xff]
  %v171 = vld [vmem:[%s3 + $0x48] sm:$0xff]
  %v172 = vld [vmem:[%s3 + $0x50] sm:$0xff]
  %v173 = vld [vmem:[%s3 + $0x58] sm:$0xff]
  %v174 = vld [vmem:[%s3 + $0x60] sm:$0xff]
  %v175 = vld [vmem:[%s3 + $0x68] sm:$0xff]
  %v176 = vld [vmem:[%s3 + $0x70] sm:$0xff]
  %v177 = vld [vmem:[%s3 + $0x78] sm:$0xff]
  %v178 = vld [vmem:[%s3 + $0x80] sm:$0xff]
  %v179 = vld [vmem:[%s3 + $0x88] sm:$0xff]
  %v180 = vld [vmem:[%s3 + $0x90] sm:$0xff]
  %v181 = vld [vmem:[%s3 + $0x98] sm:$0xff]
  %v182 = vld [vmem:[%s3 + $0xa0] sm:$0xff]
  %v183 = vld [vmem:[%s3 + $0xa8] sm:$0xff]
  %v184 = vld [vmem:[%s3 + $0xb0] sm:$0xff]
  %v185 = vld [vmem:[%s3 + $0xb8] sm:$0xff]
  %v186 = vld [vmem:[%s3 + $0xc0] sm:$0xff]
  %v187 = vld [vmem:[%s3 + $0xc8] sm:$0xff]
  %v188 = vld [vmem:[%s3 + $0xd0] sm:$0xff]
  %v189 = vld [vmem:[%s3 + $0xd8] sm:$0xff]
  %v190 = vld [vmem:[%s3 + $0xe0] sm:$0xff]
  %v191 = vld [vmem:[%s3 + $0xe8] sm:$0xff]
  %v192 = vld [vmem:[%s3 + $0xf0] sm:$0xff]
  %v193 = vld [vmem:[%s3 + $0xf8] sm:$0xff]
  %v194 = vld [vmem:[%s3 + $0x100] sm:$0xff]
  %v195 = vld [vmem:[%s3 + $0x108] sm:$0xff]
  %v196 = vld [vmem:[%s3 + $0x110] sm:$0xff]
  %v197 = vld [vmem:[%s3 + $0x118] sm:$0xff]
  %v198 = vpack.c.bf16 %v164, %v162
  %v199 = vpack.c.bf16 %v165, %v163
  %v200 = vpack.c.bf16 %v168, %v166
  %v201 = vpack.c.bf16 %v169, %v167
  %v202 = vpack.c.bf16 %v172, %v170
  %v203 = vpack.c.bf16 %v173, %v171
  %v204 = vpack.c.bf16 %v176, %v174
  %v205 = vpack.c.bf16 %v177, %v175
  %v206 = vpack.c.bf16 %v180, %v178
  %v207 = vpack.c.bf16 %v181, %v179
  %v208 = vpack.c.bf16 %v184, %v182
  %v209 = vpack.c.bf16 %v185, %v183
  %v210 = vpack.c.bf16 %v188, %v186
  %v211 = vpack.c.bf16 %v189, %v187
  %v212 = vpack.c.bf16 %v192, %v190
  %v213 = vpack.c.bf16 %v193, %v191
  %v214 = vpack.c.bf16 %v196, %v194
  %v215 = vpack.c.bf16 %v197, %v195
  %vm216 = vcmask 130048
  %v218 = vsel %vm216, %v157, 0
  %v221 = vsel %vm216, %v159, 0
  %v224 = vsel %vm216, %v161, 0
  %226 = vmatprep.subr.bf16.mxu0 %v199
  %227 = vmatpush1.bf16.msra.mxu0 %v198
  %228 = vmatprep.subr.bf16.mxu0 %v201
  %229 = vmatpush1.bf16.msra.mxu0 %v200
  %230 = vmatprep.subr.bf16.mxu0 %v203
  %231 = vmatpush1.bf16.msra.mxu0 %v202
  %232 = vmatprep.subr.bf16.mxu0 %v205
  %233 = vmatpush1.bf16.msra.mxu0 %v204
  %234 = vmatprep.subr.bf16.mxu0 %v207
  %235 = vmatpush1.bf16.msra.mxu0 %v206
  %236 = vmatprep.subr.bf16.mxu0 %v209
  %237 = vmatpush1.bf16.msra.mxu0 %v208
  %238 = vmatprep.subr.bf16.mxu0 %v211
  %239 = vmatpush1.bf16.msra.mxu0 %v210
  %240 = vmatprep.subr.bf16.mxu0 %v213
  %241 = vmatpush1.bf16.msra.mxu0 %v212
  %242 = vmatprep.subr.bf16.mxu0 %v215
  %243 = vmatpush1.bf16.msra.mxu0 %v214
  %244 = vmatprep.subr.bf16.mxu0 0
  %245 = vmatpush1.bf16.msra.mxu0 0
  %246 = vmatprep.subr.bf16.mxu0 0
  %247 = vmatpush1.bf16.msra.mxu0 0
  %248 = vmatprep.subr.bf16.mxu0 0
  %249 = vmatpush1.bf16.msra.mxu0 0
  %250 = vmatprep.subr.bf16.mxu0 0
  %251 = vmatpush1.bf16.msra.mxu0 0
  %252 = vmatprep.subr.bf16.mxu0 0
  %253 = vmatpush1.bf16.msra.mxu0 0
  %254 = vmatprep.subr.bf16.mxu0 0
  %255 = vmatpush1.bf16.msra.mxu0 0
  %256 = vmatprep.subr.bf16.mxu0 0
  %257 = vmatpush1.bf16.msra.mxu0 0
  %258 = vmatprep.mubr.bf16.mxu0 %v218
  %259 = vmatmul.mubr.bf16.gmra.mrb[0].mxu0 %v156
  %v260 = vpop.f32.mrb[0].mxu0
  %v261 = vadd.f32 0.0, %v260
  %v262 = vpop.f32.mrb[0].mxu0
  %v263 = vadd.f32 0.0, %v262
  %v264 = vpop.f32.mrb[0].mxu0
  %v265 = vadd.f32 0.0, %v264
  %v266 = vpop.f32.mrb[0].mxu0
  %v267 = vadd.f32 0.0, %v266
  %268 = vmatprep.mubr.bf16.mxu0 %v221
  %269 = vmatmul.mubr.bf16.gmra.mrb[0].mxu0 %v158
  %v270 = vpop.f32.mrb[0].mxu0
  %v271 = vadd.f32 0.0, %v270
  %v272 = vpop.f32.mrb[0].mxu0
  %v273 = vadd.f32 0.0, %v272
  %v274 = vpop.f32.mrb[0].mxu0
  %v275 = vadd.f32 0.0, %v274
  %v276 = vpop.f32.mrb[0].mxu0
  %v277 = vadd.f32 0.0, %v276
  %278 = vmatprep.mubr.bf16.mxu0 %v224
  %279 = vmatmul.mubr.bf16.gmra.mrb[0].mxu0 %v160
  %v280 = vpop.f32.mrb[0].mxu0
  %v281 = vadd.f32 0.0, %v280
  %v282 = vpop.f32.mrb[0].mxu0
  %v283 = vadd.f32 0.0, %v282
  %v284 = vpop.f32.mrb[0].mxu0
  %v285 = vadd.f32 0.0, %v284
  %v286 = vpop.f32.mrb[0].mxu0
  %v287 = vadd.f32 0.0, %v286
  %288 = vdwg.mxu0
  %289 = vst [vmem:[%s5] sm:$0xff] %v261
  %vm290 = vcmask 556032
  %291 = vst.msk [vmem:[%s5 + $0x8] sm:$0xff] %vm290, %v263
  %292 = vst [vmem:[%s5 + $0x10] sm:$0xff] %v265
  %293 = vst.msk [vmem:[%s5 + $0x18] sm:$0xff] %vm290, %v267
  %294 = vst [vmem:[%s5 + $0x20] sm:$0xff] %v271
  %295 = vst.msk [vmem:[%s5 + $0x28] sm:$0xff] %vm290, %v273
  %296 = vst [vmem:[%s5 + $0x30] sm:$0xff] %v275
  %297 = vst.msk [vmem:[%s5 + $0x38] sm:$0xff] %vm290, %v277
  %298 = vst [vmem:[%s5 + $0x40] sm:$0xff] %v281
  %299 = vst.msk [vmem:[%s5 + $0x48] sm:$0xff] %vm290, %v283
  %300 = vst [vmem:[%s5 + $0x50] sm:$0xff] %v285
  %301 = vst.msk [vmem:[%s5 + $0x58] sm:$0xff] %vm290, %v287
  // Predicated region
  $region22: #{se_block.1} parent=0 // pred_check
    _
  $region23: #{se_block.1} parent=0 // pred_check_branch
    %303 = sbr.rel (0) target = $region25
  $region24: #{se_block.1} parent=0 // pred_region
    _
  $region25: #{se_block.1} parent=0 // pred_fallthru
    _
  // Predicated region
  $region26: #{se_block.1} parent=0 // pred_check
    _
  $region27: #{se_block.1} parent=0 // pred_check_branch
    %305 = sbr.rel (0) target = $region29
  $region28: #{se_block.1} parent=0 // pred_region
    _
  $region29: #{se_block.1} parent=0 // pred_fallthru
    _

</llo_original>
